<compile_context>
chip_gen: v7x
topology: tpu7x:2x2x1
jax: 0.10.0
libtpu: 0.0.40
codegen_flags: <defaults>
</compile_context>

<pallas_src>
import functools

import jax
import jax.numpy as jnp
import numpy as np
from jax import lax
from jax.experimental import pallas as pl
from jax.experimental.pallas import tpu as pltpu

BN_EPS = 1e-5


def _attentive_transformer_kernel(feat_ref, w_ref, gamma_ref, beta_ref,
                                  priors_ref, out_ref, *, chunks_per_step, vbs):
    # feat_ref   : (cps, In, vbs) bf16  -- per-virtual-batch transposed features
    # w_ref      : (G, In)        bf16  -- torch Linear weight layout
    # gamma_ref  : (G, 1)         f32
    # beta_ref   : (G, 1)         f32
    # priors_ref : (cps, G, vbs)  f32   -- lane-dense (rows on lanes)
    # out_ref    : (cps, G, vbs)  f32   -- lane-dense (rows on lanes)
    w = w_ref[...]
    gamma = gamma_ref[...]
    beta = beta_ref[...]
    inv_n = 1.0 / float(vbs)
    g = out_ref.shape[1]

    def per_chunk(c, carry):
        # fc: (G, In) @ (In, vbs) on the MXU; virtual-batch rows on lanes.
        x = jnp.dot(w, feat_ref[c], preferred_element_type=jnp.float32)    # (G, vbs)

        # Ghost BatchNorm (training-mode stats): two-pass mean/variance,
        # folded affine y = (x - mean) * (gamma * rsqrt(var + eps)) + beta.
        mean = jnp.sum(x, axis=1, keepdims=True) * inv_n                   # (G, 1)
        d = x - mean
        var = jnp.sum(d * d, axis=1, keepdims=True) * inv_n                # (G, 1)
        scale = gamma * jax.lax.rsqrt(var + BN_EPS)
        z = (d * scale + beta) * priors_ref[c]                             # (G, vbs)

        # sparsemax over the group axis (now the sublane axis): exact,
        # sort-free O(G^2) formulation with sublane broadcasts.
        k = jnp.zeros_like(z)       # k[i]    = #{j : z_j >= z_i}
        csum = jnp.zeros_like(z)    # csum[i] = sum_{j : z_j >= z_i} z_j
        for j in range(g):          # static, short (group_dim) unrolled loop
            zj = z[j:j + 1, :]      # (1, vbs) sublane slice -> sublane broadcast
            ge = (zj >= z).astype(z.dtype)
            k = k + ge
            csum = csum + zj * ge
        support = (1.0 + k * z > csum).astype(z.dtype)
        k_star = jnp.sum(support, axis=0, keepdims=True)                   # (1, vbs)
        sum_star = jnp.sum(z * support, axis=0, keepdims=True)             # (1, vbs)
        tau = (sum_star - 1.0) / k_star
        out_ref[c] = jnp.maximum(z - tau, 0.0).astype(out_ref.dtype)
        return carry

    lax.fori_loop(0, chunks_per_step, per_chunk, 0)


def _pick_chunks_per_step(num_chunks, vbs, input_dim, group_dim, max_rows_per_step):
    """Virtual-batch fusion factor per grid step.

    VMEM accounting includes (sublane, lane) tile padding and the x2 double
    buffering of every DMA'd block, so the chosen block set stays well under
    the scoped VMEM limit on all generations (incl. v7x's 64 MiB physical).
    """
    pad_in = -(-input_dim // 16) * 16        # bf16 sublane tile
    pad_g = -(-group_dim // 8) * 8           # f32 sublane tile
    pad_vbs = -(-vbs // 128) * 128           # lane tile
    per_chunk_vmem = 2 * (pad_in * pad_vbs * 2      # feat^T block, bf16 (double-buffered)
                          + pad_g * pad_vbs * 4     # priors^T block, f32
                          + pad_g * pad_vbs * 4)    # out^T block, f32
    budget = 8 * 1024 * 1024
    cps_max = max(1, budget // per_chunk_vmem)
    rows_cap = 32768 if max_rows_per_step is None else int(max_rows_per_step)
    cps_max = max(1, min(cps_max, max(1, rows_cap // vbs), num_chunks))
    # Largest clean divisor of num_chunks (no ragged grid steps, no masking).
    for c in range(cps_max, 0, -1):
        if num_chunks % c == 0:
            return c
    return 1


@functools.partial(jax.jit, static_argnames=("virtual_batch_size", "max_rows_per_step"))
def attentive_transformer(priors, processed_feat, w, gamma, beta,
                          virtual_batch_size=128, max_rows_per_step=None):
    batch, input_dim = processed_feat.shape
    group_dim = w.shape[0]                      # torch Linear weight is (G, In)
    vbs = int(virtual_batch_size)
    # TODO(synk): torch.chunk allows a ragged final virtual batch; here we require
    # batch % virtual_batch_size == 0 for clean chunk-major tiling.
    assert batch % vbs == 0
    num_chunks = batch // vbs

    cps = _pick_chunks_per_step(num_chunks, vbs, input_dim, group_dim,
                                max_rows_per_step)
    grid = (num_chunks // cps,)

    # ---- layout plumbing (fused XLA copies): virtual-batch rows -> lane axis ----
    #   feat:   (batch, In) -> (nc, In, vbs) bf16   (unconditional bf16 MXU feed)
    #   priors: (batch, G)  -> (nc, G, vbs)  f32    (lane-dense loads)
    #   out:    (nc, G, vbs) f32 -> (batch, G)      (lane-dense stores, transposed back)
    feat3 = jnp.transpose(processed_feat.reshape(num_chunks, vbs, input_dim),
                          (0, 2, 1)).astype(jnp.bfloat16)
    priors3 = jnp.transpose(priors.reshape(num_chunks, vbs, group_dim),
                            (0, 2, 1)).astype(jnp.float32)
    w_bf16 = w.astype(jnp.bfloat16)
    gamma2 = gamma.reshape(group_dim, 1).astype(jnp.float32)
    beta2 = beta.reshape(group_dim, 1).astype(jnp.float32)

    kernel = functools.partial(_attentive_transformer_kernel,
                               chunks_per_step=cps, vbs=vbs)

    grid_spec = pltpu.PrefetchScalarGridSpec(
        num_scalar_prefetch=0,
        grid=grid,
        in_specs=[
            pl.BlockSpec((cps, input_dim, vbs), lambda i: (i, 0, 0)),   # feat^T chunks
            pl.BlockSpec((group_dim, input_dim), lambda i: (0, 0)),     # W
            pl.BlockSpec((group_dim, 1), lambda i: (0, 0)),             # bn gamma
            pl.BlockSpec((group_dim, 1), lambda i: (0, 0)),             # bn beta
            pl.BlockSpec((cps, group_dim, vbs), lambda i: (i, 0, 0)),   # priors^T chunks
        ],
        out_specs=pl.BlockSpec((cps, group_dim, vbs), lambda i: (i, 0, 0)),
    )

    cost = pl.CostEstimate(
        flops=2 * batch * input_dim * group_dim
              + batch * group_dim * (5 * group_dim + 16),
        transcendentals=num_chunks * group_dim,
        bytes_accessed=batch * input_dim * 2            # feat (bf16)
                       + 2 * batch * group_dim * 4      # priors + out (f32)
                       + input_dim * group_dim * 2 + 2 * group_dim * 4,
    )

    out3 = pl.pallas_call(
        kernel,
        out_shape=jax.ShapeDtypeStruct((num_chunks, group_dim, vbs), jnp.float32),
        grid_spec=grid_spec,
        compiler_params=pltpu.CompilerParams(
            dimension_semantics=("parallel",),
            vmem_limit_bytes=32 * 1024 * 1024),
        cost_estimate=cost,
    )(feat3, w_bf16, gamma2, beta2, priors3)

    return jnp.transpose(out3, (0, 2, 1)).reshape(batch, group_dim)


def init_params(key, input_dim, group_dim):
    """Deterministic init matching initialize_non_glu (xavier_normal_ with gain)."""
    gain = np.sqrt((input_dim + group_dim) / np.sqrt(4 * input_dim))
    std = gain * np.sqrt(2.0 / (input_dim + group_dim))
    # torch Linear weight layout: (group_dim, input_dim) -- used as-is by the kernel.
    w = jax.random.normal(key, (group_dim, input_dim), dtype=jnp.float32) * std
    gamma = jnp.ones((group_dim,), dtype=jnp.float32)    # BatchNorm1d weight
    beta = jnp.zeros((group_dim,), dtype=jnp.float32)    # BatchNorm1d bias
    return w, gamma, beta


def _reference(priors, processed_feat, w, gamma, beta, virtual_batch_size):
    """Pure-JAX reference with the same bf16 matmul precision as the kernel."""
    x = jnp.dot(processed_feat.astype(jnp.bfloat16), w.T.astype(jnp.bfloat16),
                preferred_element_type=jnp.float32)
    batch, g = x.shape
    nc = batch // virtual_batch_size
    x3 = x.reshape(nc, virtual_batch_size, g)
    mean = jnp.mean(x3, axis=1, keepdims=True)
    var = jnp.mean((x3 - mean) ** 2, axis=1, keepdims=True)   # biased variance
    xn = (x3 - mean) / jnp.sqrt(var + BN_EPS)
    x = xn.reshape(batch, g) * gamma.reshape(1, g) + beta.reshape(1, g)
    z = x * priors
    # sort-based sparsemax
    zs = jnp.sort(z, axis=-1)[:, ::-1]
    ks = jnp.arange(1, g + 1, dtype=z.dtype)
    zc = jnp.cumsum(zs, axis=-1)
    support = ks * zs > zc - 1.0
    k_star = jnp.sum(support, axis=-1, keepdims=True).astype(jnp.int32)
    tau = (jnp.take_along_axis(zc, k_star - 1, axis=-1) - 1.0) / k_star.astype(z.dtype)
    return jnp.maximum(z - tau, 0.0)


if __name__ == "__main__":
    # TODO(synk): BatchNorm running_mean/running_var (momentum) updates are a
    # training-time side effect of the PyTorch module and are not produced here.
    # TODO(synk): only mask_type='sparsemax' is implemented (no entmax15).
    key = jax.random.PRNGKey(0)

    configs = [
        # (batch, input_dim, group_dim, virtual_batch_size, max_rows_per_step)
        (1024, 32, 8, 128, None),   # default GBN vbs; fully fused single grid step
        (1024, 32, 8, 128, 256),    # capped step size -> grid=(4,): exercises pipelining
        (256, 16, 8, 64, None),     # small shapes, vbs below one lane tile
    ]
    for (batch, input_dim, group_dim, vbs, mrps) in configs:
        key, k_w, k_feat, k_prior = jax.random.split(key, 4)
        w, gamma, beta = init_params(k_w, input_dim, group_dim)
        processed_feat = jax.random.normal(k_feat, (batch, input_dim),
                                           dtype=jnp.float32)
        priors = jax.random.uniform(k_prior, (batch, group_dim),
                                    dtype=jnp.float32, minval=0.5, maxval=1.5)

        out = attentive_transformer(priors, processed_feat, w, gamma, beta,
                                    virtual_batch_size=vbs,
                                    max_rows_per_step=mrps)
        out = jax.block_until_ready(out)

        # Sanity: sparsemax outputs lie on the probability simplex.
        assert out.shape == (batch, group_dim)
        assert bool(jnp.all(out >= 0.0))
        assert bool(jnp.allclose(jnp.sum(out, axis=-1), 1.0, atol=1e-4))

        # Numerical check against a pure-JAX reference (same bf16 matmul).
        ref = _reference(priors, processed_feat, w, gamma, beta, vbs)
        max_err = float(jnp.max(jnp.abs(out - ref)))
        assert max_err < 5e-3, f"max abs err vs reference: {max_err}"

    print("KERNEL_OK")
</pallas_src>

<mosaic_0001>
module attributes {stable_mosaic.version = 11 : i64} {
  func.func @_attentive_transformer_kernel(%arg0: i32, %arg1: memref<8x32x128xbf16, #tpu.memory_space<vmem>>, %arg2: memref<8x32xbf16, #tpu.memory_space<vmem>>, %arg3: memref<8x1xf32, #tpu.memory_space<vmem>>, %arg4: memref<8x1xf32, #tpu.memory_space<vmem>>, %arg5: memref<8x8x128xf32, #tpu.memory_space<vmem>>, %arg6: memref<8x8x128xf32, #tpu.memory_space<vmem>>) attributes {dimension_semantics = [#tpu.dimension_semantics<parallel>], iteration_bounds = array<i64: 1>, scalar_prefetch = 0 : i64, scratch_operands = 0 : i64, tpu.core_type = #tpu.core_type<tc>, window_params = [{transform_indices = @transform_0, window_bounds = array<i64: 8, 32, 128>}, {pipeline_mode = #tpu.pipeline_mode<synchronous>, transform_indices = @transform_1, window_bounds = array<i64: 8, 32>}, {pipeline_mode = #tpu.pipeline_mode<synchronous>, transform_indices = @transform_2, window_bounds = array<i64: 8, 1>}, {pipeline_mode = #tpu.pipeline_mode<synchronous>, transform_indices = @transform_3, window_bounds = array<i64: 8, 1>}, {transform_indices = @transform_4, window_bounds = array<i64: 8, 8, 128>}, {transform_indices = @transform_5, window_bounds = array<i64: 8, 8, 128>}]} {
    %c0 = arith.constant 0 : index
    %c0_0 = arith.constant 0 : index
    %0 = vector.load %arg2[%c0, %c0_0] : memref<8x32xbf16, #tpu.memory_space<vmem>>, vector<8x32xbf16>
    %c0_1 = arith.constant 0 : index
    %c0_2 = arith.constant 0 : index
    %1 = vector.load %arg3[%c0_1, %c0_2] : memref<8x1xf32, #tpu.memory_space<vmem>>, vector<8x1xf32>
    %c0_3 = arith.constant 0 : index
    %c0_4 = arith.constant 0 : index
    %2 = vector.load %arg4[%c0_3, %c0_4] : memref<8x1xf32, #tpu.memory_space<vmem>>, vector<8x1xf32>
    %c0_i32 = arith.constant 0 : i32
    %c8_i32 = arith.constant 8 : i32
    %3 = arith.addi %c0_i32, %c8_i32 : i32
    %c1_i32 = arith.constant 1 : i32
    scf.for %arg7 = %c0_i32 to %3 step %c1_i32  : i32 {
      %4 = arith.index_cast %arg7 : i32 to index
      %c0_6 = arith.constant 0 : index
      %c0_7 = arith.constant 0 : index
      %5 = vector.load %arg1[%4, %c0_6, %c0_7] : memref<8x32x128xbf16, #tpu.memory_space<vmem>>, vector<1x32x128xbf16>
      %6 = vector.shape_cast %5 : vector<1x32x128xbf16> to vector<32x128xbf16>
      %cst = arith.constant dense<0.000000e+00> : vector<8x128xf32>
      %7 = tpu.matmul %0, %6, %cst {dimension_numbers = #tpu.dot_dimension_numbers<[1], [0], [0], [1], [0, 0, 1, 1], [], []>} : vector<8x32xbf16>, vector<32x128xbf16>, vector<8x128xf32> -> vector<8x128xf32>
      %cst_8 = arith.constant dense<0.000000e+00> : vector<8xf32>
      %8 = vector.multi_reduction <add>, %7, %cst_8 [1] : vector<8x128xf32> to vector<8xf32>
      %9 = vector.shape_cast %8 : vector<8xf32> to vector<8x1xf32>
      %cst_9 = arith.constant 7.812500e-03 : f32
      %10 = vector.broadcast %cst_9 : f32 to vector<8x1xf32>
      %11 = arith.mulf %9, %10 : vector<8x1xf32>
      %12 = vector.broadcast %11 : vector<8x1xf32> to vector<8x128xf32>
      %13 = arith.subf %7, %12 : vector<8x128xf32>
      %14 = arith.mulf %13, %13 : vector<8x128xf32>
      %cst_10 = arith.constant dense<0.000000e+00> : vector<8xf32>
      %15 = vector.multi_reduction <add>, %14, %cst_10 [1] : vector<8x128xf32> to vector<8xf32>
      %16 = vector.shape_cast %15 : vector<8xf32> to vector<8x1xf32>
      %cst_11 = arith.constant 7.812500e-03 : f32
      %17 = vector.broadcast %cst_11 : f32 to vector<8x1xf32>
      %18 = arith.mulf %16, %17 : vector<8x1xf32>
      %cst_12 = arith.constant 9.99999974E-6 : f32
      %19 = vector.broadcast %cst_12 : f32 to vector<8x1xf32>
      %20 = arith.addf %18, %19 : vector<8x1xf32>
      %21 = math.rsqrt %20 : vector<8x1xf32>
      %22 = arith.mulf %1, %21 : vector<8x1xf32>
      %23 = vector.broadcast %22 : vector<8x1xf32> to vector<8x128xf32>
      %24 = arith.mulf %13, %23 : vector<8x128xf32>
      %25 = vector.broadcast %2 : vector<8x1xf32> to vector<8x128xf32>
      %26 = arith.addf %24, %25 : vector<8x128xf32>
      %27 = arith.index_cast %arg7 : i32 to index
      %c0_13 = arith.constant 0 : index
      %c0_14 = arith.constant 0 : index
      %28 = vector.load %arg5[%27, %c0_13, %c0_14] : memref<8x8x128xf32, #tpu.memory_space<vmem>>, vector<1x8x128xf32>
      %29 = vector.shape_cast %28 : vector<1x8x128xf32> to vector<8x128xf32>
      %30 = arith.mulf %26, %29 : vector<8x128xf32>
      %cst_15 = arith.constant 0.000000e+00 : f32
      %31 = vector.broadcast %cst_15 : f32 to vector<8x128xf32>
      %cst_16 = arith.constant 0.000000e+00 : f32
      %32 = vector.broadcast %cst_16 : f32 to vector<8x128xf32>
      %33 = vector.extract_strided_slice %30 {offsets = [0, 0], sizes = [1, 128], strides = [1, 1]} : vector<8x128xf32> to vector<1x128xf32>
      %34 = vector.broadcast %33 : vector<1x128xf32> to vector<8x128xf32>
      %35 = arith.cmpf oge, %34, %30 : vector<8x128xf32>
      %36 = arith.extui %35 : vector<8x128xi1> to vector<8x128xi32>
      %37 = arith.sitofp %36 : vector<8x128xi32> to vector<8x128xf32>
      %38 = arith.addf %31, %37 : vector<8x128xf32>
      %39 = vector.broadcast %33 : vector<1x128xf32> to vector<8x128xf32>
      %40 = arith.mulf %39, %37 : vector<8x128xf32>
      %41 = arith.addf %32, %40 : vector<8x128xf32>
      %42 = vector.extract_strided_slice %30 {offsets = [1, 0], sizes = [1, 128], strides = [1, 1]} : vector<8x128xf32> to vector<1x128xf32>
      %43 = vector.broadcast %42 : vector<1x128xf32> to vector<8x128xf32>
      %44 = arith.cmpf oge, %43, %30 : vector<8x128xf32>
      %45 = arith.extui %44 : vector<8x128xi1> to vector<8x128xi32>
      %46 = arith.sitofp %45 : vector<8x128xi32> to vector<8x128xf32>
      %47 = arith.addf %38, %46 : vector<8x128xf32>
      %48 = vector.broadcast %42 : vector<1x128xf32> to vector<8x128xf32>
      %49 = arith.mulf %48, %46 : vector<8x128xf32>
      %50 = arith.addf %41, %49 : vector<8x128xf32>
      %51 = vector.extract_strided_slice %30 {offsets = [2, 0], sizes = [1, 128], strides = [1, 1]} : vector<8x128xf32> to vector<1x128xf32>
      %52 = vector.broadcast %51 : vector<1x128xf32> to vector<8x128xf32>
      %53 = arith.cmpf oge, %52, %30 : vector<8x128xf32>
      %54 = arith.extui %53 : vector<8x128xi1> to vector<8x128xi32>
      %55 = arith.sitofp %54 : vector<8x128xi32> to vector<8x128xf32>
      %56 = arith.addf %47, %55 : vector<8x128xf32>
      %57 = vector.broadcast %51 : vector<1x128xf32> to vector<8x128xf32>
      %58 = arith.mulf %57, %55 : vector<8x128xf32>
      %59 = arith.addf %50, %58 : vector<8x128xf32>
      %60 = vector.extract_strided_slice %30 {offsets = [3, 0], sizes = [1, 128], strides = [1, 1]} : vector<8x128xf32> to vector<1x128xf32>
      %61 = vector.broadcast %60 : vector<1x128xf32> to vector<8x128xf32>
      %62 = arith.cmpf oge, %61, %30 : vector<8x128xf32>
      %63 = arith.extui %62 : vector<8x128xi1> to vector<8x128xi32>
      %64 = arith.sitofp %63 : vector<8x128xi32> to vector<8x128xf32>
      %65 = arith.addf %56, %64 : vector<8x128xf32>
      %66 = vector.broadcast %60 : vector<1x128xf32> to vector<8x128xf32>
      %67 = arith.mulf %66, %64 : vector<8x128xf32>
      %68 = arith.addf %59, %67 : vector<8x128xf32>
      %69 = vector.extract_strided_slice %30 {offsets = [4, 0], sizes = [1, 128], strides = [1, 1]} : vector<8x128xf32> to vector<1x128xf32>
      %70 = vector.broadcast %69 : vector<1x128xf32> to vector<8x128xf32>
      %71 = arith.cmpf oge, %70, %30 : vector<8x128xf32>
      %72 = arith.extui %71 : vector<8x128xi1> to vector<8x128xi32>
      %73 = arith.sitofp %72 : vector<8x128xi32> to vector<8x128xf32>
      %74 = arith.addf %65, %73 : vector<8x128xf32>
      %75 = vector.broadcast %69 : vector<1x128xf32> to vector<8x128xf32>
      %76 = arith.mulf %75, %73 : vector<8x128xf32>
      %77 = arith.addf %68, %76 : vector<8x128xf32>
      %78 = vector.extract_strided_slice %30 {offsets = [5, 0], sizes = [1, 128], strides = [1, 1]} : vector<8x128xf32> to vector<1x128xf32>
      %79 = vector.broadcast %78 : vector<1x128xf32> to vector<8x128xf32>
      %80 = arith.cmpf oge, %79, %30 : vector<8x128xf32>
      %81 = arith.extui %80 : vector<8x128xi1> to vector<8x128xi32>
      %82 = arith.sitofp %81 : vector<8x128xi32> to vector<8x128xf32>
      %83 = arith.addf %74, %82 : vector<8x128xf32>
      %84 = vector.broadcast %78 : vector<1x128xf32> to vector<8x128xf32>
      %85 = arith.mulf %84, %82 : vector<8x128xf32>
      %86 = arith.addf %77, %85 : vector<8x128xf32>
      %87 = vector.extract_strided_slice %30 {offsets = [6, 0], sizes = [1, 128], strides = [1, 1]} : vector<8x128xf32> to vector<1x128xf32>
      %88 = vector.broadcast %87 : vector<1x128xf32> to vector<8x128xf32>
      %89 = arith.cmpf oge, %88, %30 : vector<8x128xf32>
      %90 = arith.extui %89 : vector<8x128xi1> to vector<8x128xi32>
      %91 = arith.sitofp %90 : vector<8x128xi32> to vector<8x128xf32>
      %92 = arith.addf %83, %91 : vector<8x128xf32>
      %93 = vector.broadcast %87 : vector<1x128xf32> to vector<8x128xf32>
      %94 = arith.mulf %93, %91 : vector<8x128xf32>
      %95 = arith.addf %86, %94 : vector<8x128xf32>
      %96 = vector.extract_strided_slice %30 {offsets = [7, 0], sizes = [1, 128], strides = [1, 1]} : vector<8x128xf32> to vector<1x128xf32>
      %97 = vector.broadcast %96 : vector<1x128xf32> to vector<8x128xf32>
      %98 = arith.cmpf oge, %97, %30 : vector<8x128xf32>
      %99 = arith.extui %98 : vector<8x128xi1> to vector<8x128xi32>
      %100 = arith.sitofp %99 : vector<8x128xi32> to vector<8x128xf32>
      %101 = arith.addf %92, %100 : vector<8x128xf32>
      %102 = vector.broadcast %96 : vector<1x128xf32> to vector<8x128xf32>
      %103 = arith.mulf %102, %100 : vector<8x128xf32>
      %104 = arith.addf %95, %103 : vector<8x128xf32>
      %105 = arith.mulf %101, %30 : vector<8x128xf32>
      %cst_17 = arith.constant 1.000000e+00 : f32
      %106 = vector.broadcast %cst_17 : f32 to vector<8x128xf32>
      %107 = arith.addf %106, %105 : vector<8x128xf32>
      %108 = arith.cmpf ogt, %107, %104 : vector<8x128xf32>
      %109 = arith.extui %108 : vector<8x128xi1> to vector<8x128xi32>
      %110 = arith.sitofp %109 : vector<8x128xi32> to vector<8x128xf32>
      %cst_18 = arith.constant dense<0.000000e+00> : vector<128xf32>
      %111 = vector.multi_reduction <add>, %110, %cst_18 [0] : vector<8x128xf32> to vector<128xf32>
      %112 = vector.shape_cast %111 : vector<128xf32> to vector<1x128xf32>
      %113 = arith.mulf %30, %110 : vector<8x128xf32>
      %cst_19 = arith.constant dense<0.000000e+00> : vector<128xf32>
      %114 = vector.multi_reduction <add>, %113, %cst_19 [0] : vector<8x128xf32> to vector<128xf32>
      %115 = vector.shape_cast %114 : vector<128xf32> to vector<1x128xf32>
      %cst_20 = arith.constant 1.000000e+00 : f32
      %116 = vector.broadcast %cst_20 : f32 to vector<1x128xf32>
      %117 = arith.subf %115, %116 : vector<1x128xf32>
      %118 = arith.divf %117, %112 : vector<1x128xf32>
      %119 = vector.broadcast %118 : vector<1x128xf32> to vector<8x128xf32>
      %120 = arith.subf %30, %119 : vector<8x128xf32>
      %cst_21 = arith.constant 0.000000e+00 : f32
      %121 = vector.broadcast %cst_21 : f32 to vector<8x128xf32>
      %122 = arith.maximumf %120, %121 : vector<8x128xf32>
      %123 = arith.index_cast %arg7 : i32 to index
      %c0_22 = arith.constant 0 : index
      %c0_23 = arith.constant 0 : index
      %124 = vector.load %arg6[%123, %c0_22, %c0_23] : memref<8x8x128xf32, #tpu.memory_space<vmem>>, vector<1x8x128xf32>
      %125 = vector.shape_cast %124 : vector<1x8x128xf32> to vector<8x128xf32>
      %126 = vector.shape_cast %122 : vector<8x128xf32> to vector<1x8x128xf32>
      tpu.vector_store %arg6[%123, %c0_22, %c0_23], %126 {strides = array<i32>} : memref<8x8x128xf32, #tpu.memory_space<vmem>>, vector<1x8x128xf32>,
    }
    %c8_i32_5 = arith.constant 8 : i32
    return
  }
  func.func @transform_0(%arg0: i32) -> (i32, i32, i32) {
    %c0_i32 = arith.constant 0 : i32
    %c0_i32_0 = arith.constant 0 : i32
    %c0_i32_1 = arith.constant 0 : i32
    return %arg0, %c0_i32, %c0_i32_0 : i32, i32, i32
  }
  func.func @transform_1(%arg0: i32) -> (i32, i32) {
    %c0_i32 = arith.constant 0 : i32
    %c0_i32_0 = arith.constant 0 : i32
    %c0_i32_1 = arith.constant 0 : i32
    return %c0_i32, %c0_i32_0 : i32, i32
  }
  func.func @transform_2(%arg0: i32) -> (i32, i32) {
    %c0_i32 = arith.constant 0 : i32
    %c0_i32_0 = arith.constant 0 : i32
    %c0_i32_1 = arith.constant 0 : i32
    return %c0_i32, %c0_i32_0 : i32, i32
  }
  func.func @transform_3(%arg0: i32) -> (i32, i32) {
    %c0_i32 = arith.constant 0 : i32
    %c0_i32_0 = arith.constant 0 : i32
    %c0_i32_1 = arith.constant 0 : i32
    return %c0_i32, %c0_i32_0 : i32, i32
  }
  func.func @transform_4(%arg0: i32) -> (i32, i32, i32) {
    %c0_i32 = arith.constant 0 : i32
    %c0_i32_0 = arith.constant 0 : i32
    %c0_i32_1 = arith.constant 0 : i32
    return %arg0, %c0_i32, %c0_i32_0 : i32, i32, i32
  }
  func.func @transform_5(%arg0: i32) -> (i32, i32, i32) {
    %c0_i32 = arith.constant 0 : i32
    %c0_i32_0 = arith.constant 0 : i32
    %c0_i32_1 = arith.constant 0 : i32
    return %arg0, %c0_i32, %c0_i32_0 : i32, i32, i32
  }
}

</mosaic_0001>

<llo_original>
// kernel: attentive_transformer.1
$region0: #{attentive_transformer.1}
  #allocation0 [shape = 'u32[]', space=smem, size = 0x4, offset = 0x4, fixed_abs, tag = 'smem constant byte address 0x4 - core index']
  #allocation1 [shape = 'u32[144,128]{1,0:T(1,128)}', space=vmem, size = 0x12000, scoped, tag = 'internal scratch']
  %s0 = inlined_call_operand.vmem [shape: bf16[8,32,128], index: 0, kind: input, shape index: {}]
  %s1 = inlined_call_operand.vmem [shape: bf16[8,32], index: 1, kind: input, shape index: {}]
  %s2 = inlined_call_operand.vmem [shape: f32[8,1], index: 2, kind: input, shape index: {}]
  %s3 = inlined_call_operand.vmem [shape: f32[8,1], index: 3, kind: input, shape index: {}]
  %s4 = inlined_call_operand.vmem [shape: f32[8,8,128], index: 4, kind: input, shape index: {}]
  %s5 = inlined_call_operand.hbm [shape: f32[8,8,128], index: 5, kind: output, shape index: {}]
  %s6 = sld [smem:[#allocation0]]
  $region37: #{attentive_transformer.1} parent=0
    _
  %s8 = ssub.s32 1, %s6
  %s9 = scalar_select 0, %s8, %s6
  $region1: #{attentive_transformer.1} parent=0
    #allocation2 [shape = 'u8[32768]{0}', space=vmem, size = 0x8000, scoped, tag = 'output window, operand 0, single buffered']
    #allocation3 [shape = 's32[1]{0}', space=sflag, size = 0x4, scoped, tag = 'scoped memory for attentive_transformer.1']
    %10 = vsyncpa [#allocation3], 0
    // Predicated region
    $region2: #{attentive_transformer.1} parent=1 // pred_check
      _
    $region3: #{attentive_transformer.1} parent=1 // pred_check_branch
      %12 = sbr.rel (0) target = $region5
    $region4: #{attentive_transformer.1} parent=1 // pred_region
      _
    $region5: #{attentive_transformer.1} parent=1 // pred_fallthru
      _
    // Predicated region
    $region6: #{attentive_transformer.1} parent=1 // pred_check
      _
    $region7: #{attentive_transformer.1} parent=1 // pred_check_branch
      %14 = sbr.rel (0) target = $region9
    $region8: #{attentive_transformer.1} parent=1 // pred_region
      _
    $region9: #{attentive_transformer.1} parent=1 // pred_fallthru
      _
    // Predicated region
    $region10: #{attentive_transformer.1} parent=1 // pred_check
      _
    $region11: #{attentive_transformer.1} parent=1 // pred_check_branch
      %16 = sbr.rel (0) target = $region13
    $region12: #{attentive_transformer.1} parent=1 // pred_region
      _
    $region13: #{attentive_transformer.1} parent=1 // pred_fallthru
      _
    // Predicated region
    $region14: #{attentive_transformer.1} parent=1 // pred_check
      _
    $region15: #{attentive_transformer.1} parent=1 // pred_check_branch
      %18 = sbr.rel (0) target = $region17
    $region16: #{attentive_transformer.1} parent=1 // pred_region
      _
    $region17: #{attentive_transformer.1} parent=1 // pred_fallthru
      _
    // Predicated region
    $region18: #{attentive_transformer.1} parent=1 // pred_check
      _
    $region19: #{attentive_transformer.1} parent=1 // pred_check_branch
      %20 = sbr.rel (0) target = $region21
    $region20: #{attentive_transformer.1} parent=1 // pred_region
      _
    $region21: #{attentive_transformer.1} parent=1 // pred_fallthru
      _
    %v22 = vld [vmem:[%s1] sm:$0xf]
    %v23 = vld [vmem:[%s2] sm:$0xff]
    %v24 = vld [vmem:[%s3] sm:$0xff]
    loop: start=0, step=1, limit=8
    $region22: #{attentive_transformer.1} parent=1 // loop_pre_header
      _
    $region23: #{attentive_transformer.1} parent=1 // loop_header
      %s26 = sphi 0, %s30
      %p27 = scmp.ge.s32.totalorder %s26, 8
    $region24: #{attentive_transformer.1} parent=1 // loop_header_branch
      %29 = sbr.rel (%p27) target = $region28
    $region25: #{attentive_transformer.1} parent=1 // loop_body
      %s31 = smul.u32 %s26, 4
      %s32 = smul.addr %s31, 4
      %s33 = scalar_lea.vmem %s0, %s32
      %v34 = vld [vmem:[%s33] sm:$0xf]
      %v35 = vld [vmem:[%s33 + $0x4] sm:$0xf]
      %v36 = vld [vmem:[%s33 + $0x8] sm:$0xf]
      %v37 = vld [vmem:[%s33 + $0xc] sm:$0xf]
      %v42 = vunpack.c.l.b16 %v34
      %v43 = vunpack.c.l.b16 %v35
      %v44 = vunpack.c.l.b16 %v36
      %v45 = vunpack.c.l.b16 %v37
      %v46 = vpack.c.b16 %v43, %v42
      %v47 = vpack.c.b16 %v45, %v44
      %vm50 = vcmask 261120
      %v52 = vsel %vm50, %v22, 0
      %54 = vmatprep.subr.bf16.mxu0 0
      %55 = vmatpush1.bf16.msra.mxu0 %v46
      %56 = vmatprep.subr.bf16.mxu0 0
      %57 = vmatpush1.bf16.msra.mxu0 %v47
      %58 = vmatprep.subr.bf16.mxu0 0
      %59 = vmatpush1.bf16.msra.mxu0 0
      %60 = vmatprep.subr.bf16.mxu0 0
      %61 = vmatpush1.bf16.msra.mxu0 0
      %62 = vmatprep.subr.bf16.mxu0 0
      %63 = vmatpush1.bf16.msra.mxu0 0
      %64 = vmatprep.subr.bf16.mxu0 0
      %65 = vmatpush1.bf16.msra.mxu0 0
      %66 = vmatprep.subr.bf16.mxu0 0
      %67 = vmatpush1.bf16.msra.mxu0 0
      %68 = vmatprep.subr.bf16.mxu0 0
      %69 = vmatpush1.bf16.msra.mxu0 0
      %70 = vmatprep.subr.bf16.mxu0 0
      %71 = vmatpush1.bf16.msra.mxu0 0
      %72 = vmatprep.subr.bf16.mxu0 0
      %73 = vmatpush1.bf16.msra.mxu0 0
      %74 = vmatprep.subr.bf16.mxu0 0
      %75 = vmatpush1.bf16.msra.mxu0 0
      %76 = vmatprep.subr.bf16.mxu0 0
      %77 = vmatpush1.bf16.msra.mxu0 0
      %78 = vmatprep.subr.bf16.mxu0 0
      %79 = vmatpush1.bf16.msra.mxu0 0
      %80 = vmatprep.subr.bf16.mxu0 0
      %81 = vmatpush1.bf16.msra.mxu0 0
      %82 = vmatprep.subr.bf16.mxu0 0
      %83 = vmatpush1.bf16.msra.mxu0 0
      %84 = vmatprep.subr.bf16.mxu0 0
      %85 = vmatpush1.bf16.msra.mxu0 0
      %86 = vmatprep.mubr.bf16.mxu0 0
      %87 = vmatmul.mubr.bf16.gmra.mrb[0].mxu0 %v52
      %v88 = vpop.f32.mrb[0].mxu0
      %v89 = vadd.f32 0.0, %v88
      %v90 = vpop.f32.mrb[0].mxu0
      %v91 = vpop.f32.mrb[0].mxu0
      %v92 = vpop.f32.mrb[0].mxu0
      %93 = vdwg.mxu0
      %94 = vadd.xlane.f32.xlu0 %v89
      %v95 = vpop.xlane.xlu0 %94
      %v96 = vmul.f32 %v95, 0.0078125
      %v97 = vsub.f32 %v89, %v96
      %v98 = vmul.f32 %v97, %v97
      %99 = vadd.xlane.f32.xlu0 %v98
      %v100 = vpop.xlane.xlu0 %99
      %v101 = vmul.f32 %v100, 0.0078125
      %v102 = vadd.f32 %v101, 1e-05
      %v103 = vrsqrt.pop %v102
      %v104 = vmul.f32 %v23, %v103
      %106 = vset.pattern.permute.xlu0 0
      %107 = vperm.xlu0 %106, %v104
      %v108 = vpop.permute.xlu0 %107
      %v110 = vmul.f32 %v97, %v108
      %112 = vset.pattern.permute.xlu0 0
      %113 = vperm.xlu0 %112, %v24
      %v114 = vpop.permute.xlu0 %113
      %v116 = vadd.f32 %v110, %v114
      %s117 = smul.u32 %s26, 8
      %s118 = scalar_lea.vmem %s4, %s117
      %v119 = vld [vmem:[%s118] sm:$0xff]
      %v120 = vmul.f32 %v116, %v119
      %v121 = vlaneseq
      %v122 = vshrl.u32 %v121, 7
      %v123 = vsub.s32 0, %v122
      %v124 = vrot.slane %v120, %v123
      %vm125 = vcmp.ge.f32.partialorder %v124, %v120
      %v126 = vsel %vm125, 1, 0
      %v127 = vcvt.s32.f32 %v126
      %v128 = vadd.f32 %v127, 0.0
      %v129 = vmul.f32 %v124, %v127
      %v130 = vadd.f32 %v129, 0.0
      %v131 = vlaneseq
      %v132 = vshrl.u32 %v131, 7
      %v133 = vsub.s32 1, %v132
      %v134 = vrot.slane %v120, %v133
      %vm135 = vcmp.ge.f32.partialorder %v134, %v120
      %v136 = vsel %vm135, 1, 0
      %v137 = vcvt.s32.f32 %v136
      %v138 = vadd.f32 %v128, %v137
      %v139 = vmul.f32 %v134, %v137
      %v140 = vadd.f32 %v130, %v139
      %v141 = vlaneseq
      %v142 = vshrl.u32 %v141, 7
      %v143 = vsub.s32 2, %v142
      %v144 = vrot.slane %v120, %v143
      %vm145 = vcmp.ge.f32.partialorder %v144, %v120
      %v146 = vsel %vm145, 1, 0
      %v147 = vcvt.s32.f32 %v146
      %v148 = vadd.f32 %v138, %v147
      %v149 = vmul.f32 %v144, %v147
      %v150 = vadd.f32 %v140, %v149
      %v151 = vlaneseq
      %v152 = vshrl.u32 %v151, 7
      %v153 = vsub.s32 3, %v152
      %v154 = vrot.slane %v120, %v153
      %vm155 = vcmp.ge.f32.partialorder %v154, %v120
      %v156 = vsel %vm155, 1, 0
      %v157 = vcvt.s32.f32 %v156
      %v158 = vadd.f32 %v148, %v157
      %v159 = vmul.f32 %v154, %v157
      %v160 = vadd.f32 %v150, %v159
      %v161 = vlaneseq
      %v162 = vshrl.u32 %v161, 7
      %v163 = vsub.s32 4, %v162
      %v164 = vrot.slane %v120, %v163
      %vm165 = vcmp.ge.f32.partialorder %v164, %v120
      %v166 = vsel %vm165, 1, 0
      %v167 = vcvt.s32.f32 %v166
      %v168 = vadd.f32 %v158, %v167
      %v169 = vmul.f32 %v164, %v167
      %v170 = vadd.f32 %v160, %v169
      %v171 = vlaneseq
      %v172 = vshrl.u32 %v171, 7
      %v173 = vsub.s32 5, %v172
      %v174 = vrot.slane %v120, %v173
      %vm175 = vcmp.ge.f32.partialorder %v174, %v120
      %v176 = vsel %vm175, 1, 0
      %v177 = vcvt.s32.f32 %v176
      %v178 = vadd.f32 %v168, %v177
      %v179 = vmul.f32 %v174, %v177
      %v180 = vadd.f32 %v170, %v179
      %v181 = vlaneseq
      %v182 = vshrl.u32 %v181, 7
      %v183 = vsub.s32 6, %v182
      %v184 = vrot.slane %v120, %v183
      %vm185 = vcmp.ge.f32.partialorder %v184, %v120
      %v186 = vsel %vm185, 1, 0
      %v187 = vcvt.s32.f32 %v186
      %v188 = vadd.f32 %v178, %v187
      %v189 = vmul.f32 %v184, %v187
      %v190 = vadd.f32 %v180, %v189
      %v191 = vlaneseq
      %v192 = vshrl.u32 %v191, 7
      %v193 = vsub.s32 7, %v192
      %v194 = vrot.slane %v120, %v193
      %vm195 = vcmp.ge.f32.partialorder %v194, %v120
      %v196 = vsel %vm195, 1, 0
      %v197 = vcvt.s32.f32 %v196
      %v198 = vadd.f32 %v188, %v197
      %v199 = vmul.f32 %v194, %v197
      %v200 = vadd.f32 %v190, %v199
      %v201 = vmul.f32 %v198, %v120
      %v202 = vadd.f32 %v201, 1.0
      %vm203 = vcmp.gt.f32.partialorder %v202, %v200
      %v204 = vsel %vm203, 1, 0
      %v205 = vcvt.s32.f32 %v204
      %v206 = vrot.slane %v205, 4
      %v207 = vadd.f32 %v205, %v206
      %v208 = vrot.slane %v207, 2
      %v209 = vadd.f32 %v207, %v208
      %v210 = vrot.slane %v209, 1
      %v211 = vadd.f32 %v209, %v210
      %v212 = vmul.f32 %v120, %v205
      %v213 = vrot.slane %v212, 4
      %v214 = vadd.f32 %v212, %v213
      %v215 = vrot.slane %v214, 2
      %v216 = vadd.f32 %v214, %v215
      %v217 = vrot.slane %v216, 1
      %v218 = vadd.f32 %v216, %v217
      %v219 = vsub.f32 %v218, 1.0
      %v220 = vrcp.pop %v211
      %v221 = vmul.f32 %v219, %v220
      %v222 = vsub.f32 %v120, %v221
      %v223 = vmax.f32 %v222, 0.0
      %s224 = scalar_lea.vmem [#allocation2], %s117
      %225 = vst [vmem:[%s224] sm:$0xff] %v223
    $region26: #{attentive_transformer.1} parent=1 // loop_footer
      %s30 = sadd.s32 1, %s26
    $region27: #{attentive_transformer.1} parent=1 // loop_footer_branch
      %25 = sbr.rel target = $region23
    $region28: #{attentive_transformer.1} parent=1 // loop_exit
      _
    // Predicated region
    $region29: #{attentive_transformer.1} parent=1 // pred_check
      _
    $region30: #{attentive_transformer.1} parent=1 // pred_check_branch
      %227 = sbr.rel (0) target = $region32
    $region31: #{attentive_transformer.1} parent=1 // pred_region
      %s229 = ssub.s32 1024, 1024
      %230 = vsyncadd [#allocation3], %s229
      %s231 = sshll.u32 [#allocation2], 4
      %s232 = int_to_ptr.vmem [resolvable:$true] %s231
      %237 = dma.vmem_to_hbm [thread:$0]  %s232, 1024, %s5, [#allocation3], 128, 128, 8
    $region32: #{attentive_transformer.1} parent=1 // pred_fallthru
      _
    // Predicated region
    $region33: #{attentive_transformer.1} parent=1 // pred_check
      _
    $region34: #{attentive_transformer.1} parent=1 // pred_check_branch
      %239 = sbr.rel (0) target = $region36
    $region35: #{attentive_transformer.1} parent=1 // pred_region
      %240 = dma.done [#allocation3], 1024
    $region36: #{attentive_transformer.1} parent=1 // pred_fallthru
      _
    %241 = vsyncpa [#allocation3], 1

</llo_original>
